<compile_context>
chip_gen: v7x
topology: tpu7x:2x2x1
jax: 0.10.0
libtpu: 0.0.40
codegen_flags: <defaults>
</compile_context>

<pallas_src>
import functools

import jax
import jax.numpy as jnp
from jax import lax
from jax.experimental import pallas as pl
from jax.experimental.pallas import tpu as pltpu


def _apply_mask_kernel(x_ref, m_ref, o_ref):
    """x_ref: (tc, tl) tile of x[b]; m_ref: (1, tl) tile of the scale-folded
    block mask for batch b; o_ref: (tc, tl) output tile."""
    m = m_ref[...].astype(x_ref.dtype)   # tiny cast, once per block
    o_ref[...] = x_ref[...] * m          # sublane-broadcast over channel rows


def _pick_tile(dim, align, cap):
    """Largest legal tile: full dim if it fits under `cap`, otherwise the
    biggest multiple of `align` <= cap (keeps the (8, 128) block rule)."""
    if dim <= cap:
        return dim
    return max(align, (cap // align) * align)


@functools.partial(jax.jit, static_argnames=("drop_rate", "block_size"))
def drop_block_1d(x, key, drop_rate=0.1, block_size=7):
    """Forward pass of Drop (DropBlock 1d). x: (B, C, L)."""
    if drop_rate == 0:
        return x
    B, C, L = x.shape
    gamma = drop_rate / block_size ** 2

    # ---- tiny (B, L) mask / scale pass (plain JAX; negligible vs x traffic) ----
    # mask = (torch.rand(B, L) < gamma).float(): same distribution via JAX RNG.
    mask = (jax.random.uniform(key, (B, L), dtype=jnp.float32) < gamma).astype(
        jnp.float32
    )
    pad = block_size // 2
    pooled = lax.reduce_window(
        mask, -jnp.inf, lax.max,
        window_dimensions=(1, block_size),
        window_strides=(1, 1),
        padding=((0, 0), (pad, pad)),
    )
    if block_size % 2 == 0:          # matches the [:, :, :-1] crop in PyTorch
        pooled = pooled[:, :-1]
    block_mask = 1.0 - pooled
    # NOTE: scale is +inf if everything got dropped -- same as the PyTorch module.
    scale = jnp.float32(block_mask.size) / jnp.sum(block_mask)
    mask_scaled = (block_mask * scale).reshape(B, 1, L)   # f32, scale pre-folded

    # ---- tiled, pipelined, lane-dense element-wise multiply over x ----
    tc = _pick_tile(C, 8, 256)       # channel tile (sublane axis)
    tl = _pick_tile(L, 128, 2048)    # length tile (lane axis, multiple of 128)
    grid = (B, pl.cdiv(C, tc), pl.cdiv(L, tl))

    return pl.pallas_call(
        _apply_mask_kernel,
        out_shape=jax.ShapeDtypeStruct((B, C, L), x.dtype),
        grid=grid,
        in_specs=[
            pl.BlockSpec((None, tc, tl), lambda b, c, l: (b, c, l)),
            pl.BlockSpec((None, 1, tl), lambda b, c, l: (b, 0, l)),
        ],
        out_specs=pl.BlockSpec((None, tc, tl), lambda b, c, l: (b, c, l)),
        compiler_params=pltpu.CompilerParams(
            dimension_semantics=("parallel", "parallel", "parallel"),
        ),
    )(x, mask_scaled)


def _reference(x, mask, block_size):
    """Independent pure-JAX reference (explicit shifted-max sliding window)."""
    B, L = mask.shape
    pad = block_size // 2
    mp = jnp.pad(mask, ((0, 0), (pad, block_size - 1 - pad)),
                 constant_values=-jnp.inf)
    pooled = mp[:, 0:L]
    for k in range(1, block_size):
        pooled = jnp.maximum(pooled, mp[:, k:k + L])
    block_mask = 1.0 - pooled
    out = x * block_mask[:, None, :]
    return out * block_mask.size / jnp.sum(block_mask)


if __name__ == "__main__":
    key = jax.random.PRNGKey(0)
    kx, kmask = jax.random.split(key)

    B, C, L = 2, 4, 128
    drop_rate, block_size = 0.1, 7

    x = jax.random.normal(kx, (B, C, L), dtype=jnp.float32)

    out = drop_block_1d(x, kmask, drop_rate=drop_rate, block_size=block_size)
    out = jax.block_until_ready(out)

    # Sanity check against an independent JAX reference with the same centers.
    gamma = drop_rate / block_size ** 2
    mask = (jax.random.uniform(kmask, (B, L), dtype=jnp.float32) < gamma).astype(
        jnp.float32
    )
    ref = _reference(x, mask, block_size)

    assert out.shape == (B, C, L)
    assert jnp.allclose(out, ref, atol=1e-5, rtol=1e-5), "mismatch vs reference"

    print("KERNEL_OK")
</pallas_src>

<mosaic_0001>
module attributes {stable_mosaic.version = 11 : i64} {
  func.func @_apply_mask_kernel(%arg0: i32, %arg1: i32, %arg2: i32, %arg3: memref<1x4x128xf32, #tpu.memory_space<vmem>>, %arg4: memref<1x1x128xf32, #tpu.memory_space<vmem>>, %arg5: memref<1x4x128xf32, #tpu.memory_space<vmem>>) attributes {dimension_semantics = [#tpu.dimension_semantics<parallel>, #tpu.dimension_semantics<parallel>, #tpu.dimension_semantics<parallel>], iteration_bounds = array<i64: 2, 1, 1>, scalar_prefetch = 0 : i64, scratch_operands = 0 : i64, tpu.core_type = #tpu.core_type<tc>, window_params = [{transform_indices = @transform_0, window_bounds = array<i64: 1, 4, 128>}, {transform_indices = @transform_1, window_bounds = array<i64: 1, 1, 128>}, {transform_indices = @transform_2, window_bounds = array<i64: 1, 4, 128>}]} {
    %c0 = arith.constant 0 : index
    %c0_0 = arith.constant 0 : index
    %c0_1 = arith.constant 0 : index
    %0 = vector.load %arg4[%c0, %c0_0, %c0_1] : memref<1x1x128xf32, #tpu.memory_space<vmem>>, vector<1x1x128xf32>
    %1 = vector.shape_cast %0 : vector<1x1x128xf32> to vector<1x128xf32>
    %c0_2 = arith.constant 0 : index
    %c0_3 = arith.constant 0 : index
    %c0_4 = arith.constant 0 : index
    %2 = vector.load %arg3[%c0_2, %c0_3, %c0_4] : memref<1x4x128xf32, #tpu.memory_space<vmem>>, vector<1x4x128xf32>
    %3 = vector.shape_cast %2 : vector<1x4x128xf32> to vector<4x128xf32>
    %4 = vector.broadcast %1 : vector<1x128xf32> to vector<4x128xf32>
    %5 = arith.mulf %3, %4 : vector<4x128xf32>
    %c0_5 = arith.constant 0 : index
    %c0_6 = arith.constant 0 : index
    %c0_7 = arith.constant 0 : index
    %6 = vector.load %arg5[%c0_5, %c0_6, %c0_7] : memref<1x4x128xf32, #tpu.memory_space<vmem>>, vector<1x4x128xf32>
    %7 = vector.shape_cast %6 : vector<1x4x128xf32> to vector<4x128xf32>
    %8 = vector.shape_cast %5 : vector<4x128xf32> to vector<1x4x128xf32>
    tpu.vector_store %arg5[%c0_5, %c0_6, %c0_7], %8 {strides = array<i32>} : memref<1x4x128xf32, #tpu.memory_space<vmem>>, vector<1x4x128xf32>,
    return
  }
  func.func @transform_0(%arg0: i32, %arg1: i32, %arg2: i32) -> (i32, i32, i32) {
    %c0_i32 = arith.constant 0 : i32
    return %arg0, %arg1, %arg2 : i32, i32, i32
  }
  func.func @transform_1(%arg0: i32, %arg1: i32, %arg2: i32) -> (i32, i32, i32) {
    %c0_i32 = arith.constant 0 : i32
    %c0_i32_0 = arith.constant 0 : i32
    return %arg0, %c0_i32, %arg2 : i32, i32, i32
  }
  func.func @transform_2(%arg0: i32, %arg1: i32, %arg2: i32) -> (i32, i32, i32) {
    %c0_i32 = arith.constant 0 : i32
    return %arg0, %arg1, %arg2 : i32, i32, i32
  }
}

</mosaic_0001>

<llo_original>
// kernel: drop_block_1d.1
$region0: #{drop_block_1d.1}
  #allocation0 [shape = 'u32[]', space=smem, size = 0x4, offset = 0x4, fixed_abs, tag = 'smem constant byte address 0x4 - core index']
  #allocation1 [shape = 'u32[144,128]{1,0:T(1,128)}', space=vmem, size = 0x12000, scoped, tag = 'internal scratch']
  %s0 = inlined_call_operand.vmem [shape: f32[2,4,128], index: 0, kind: input, shape index: {}]
  %s1 = inlined_call_operand.vmem [shape: f32[2,1,128], index: 1, kind: input, shape index: {}]
  %s2 = inlined_call_operand.hbm [shape: f32[2,4,128], index: 2, kind: output, shape index: {}]
  %s3 = sld [smem:[#allocation0]]
  $region41: #{drop_block_1d.1} parent=0
    _
  %s5 = ssub.s32 1, %s3
  %s6 = scalar_select 0, %s5, %s3
  $region1: #{drop_block_1d.1} parent=0
    #allocation2 [shape = 'u8[4096]{0}', space=vmem, size = 0x1000, scoped, tag = 'output window, operand 0']
    #allocation3 [shape = 's32[2]{0}', space=sflag, size = 0x8, scoped, tag = 'scoped memory for drop_block_1d.1']
    %7 = vsyncpa [#allocation3], 0
    %s8 = scalar_lea.sflag [#allocation3], 1
    %9 = vsyncpa %s8, 0
    loop: start=0, step=1, limit=4
    $region2: #{drop_block_1d.1} parent=1 // loop_pre_header
      _
    $region3: #{drop_block_1d.1} parent=1 // loop_header
      %s11 = sphi 0, %s15
      %p12 = scmp.ge.s32.totalorder %s11, 4
      %s18 = sphi 0, %s37
      %s19 = sphi 0, %s33
      %s20 = sphi 0, %s29
      %s21 = sphi 0, %s18
      %s22 = sphi 0, %s19
      %s23 = sphi 0, %s20
      %s24 = sphi 0, %s21
      %s25 = sphi 0, %s22
      %s26 = sphi 0, %s23
      %s44 = sphi 0, %s46
      %s47 = sphi 0, %s44
      %s48 = sphi 0, %s47
      %s64 = sphi 0, %s48
      %s72 = sphi 0, %s74
      %s75 = sphi 0, %s72
      %s76 = sphi 0, %s75
      %s92 = sphi 0, %s76
      %s102 = sphi 0, %s104
      %s105 = sphi 0, %s102
      %s106 = sphi 0, %s105
      %s122 = sphi 0, %s106
    $region4: #{drop_block_1d.1} parent=1 // loop_header_branch
      %14 = sbr.rel (%p12) target = $region8
    $region5: #{drop_block_1d.1} parent=1 // loop_body
      %s16 = ssub.s32 %s11, 1
      %s17 = ssub.s32 %s11, 2
      %s27 = sadd.s32 1, %s20
      %p28 = scmp.ge.s32.totalorder %s27, 1
      %s29 = scalar_select %p28, 0, %s27
      %s30 = sadd.s32 1, %s19
      %s31 = scalar_select %p28, %s30, %s19
      %p32 = scmp.ge.s32.totalorder %s31, 1
      %s33 = scalar_select %p32, 0, %s31
      %s34 = sadd.s32 1, %s18
      %s35 = scalar_select %p32, %s34, %s18
      %p36 = scmp.ge.s32.totalorder %s35, 2
      %s37 = scalar_select %p36, 0, %s35
      %s38 = ssub.s32 %s18, %s37
      %s39 = ssub.s32 %s19, %s33
      %s40 = sor.u32 %s38, %s39
      %s41 = ssub.s32 %s20, %s29
      %s42 = sor.u32 %s40, %s41
      %p43 = scmp.eq.s32.totalorder %s42, 0
      %s45 = sadd.s32 %s44, 1
      %s46 = scalar_select %p43, %s44, %s45
      %p49 = pneg %p43
      %p50 = scmp.eq.s32.totalorder %s11, 1
      %p51 = por %p49, %p50
      %p52 = scmp.ne.s32.totalorder %s44, %s47
      %p53 = scmp.eq.s32.totalorder %s11, 0
      %p54 = por %p52, %p53
      %p55 = scmp.ne.s32.totalorder %s44, %s47
      %p56 = scmp.eq.s32.totalorder %s16, 1
      %p57 = por %p55, %p56
      %p58 = scmp.ne.s32.totalorder %s47, %s48
      %p59 = scmp.eq.s32.totalorder %s16, 0
      %p60 = por %p58, %p59
      %p61 = scmp.ne.s32.totalorder %s47, %s48
      %p62 = scmp.eq.s32.totalorder %s17, 1
      %p63 = por %p61, %p62
      %p65 = scmp.ne.s32.totalorder %s48, %s64
      %p66 = scmp.eq.s32.totalorder %s17, 0
      %p67 = por %p65, %p66
      %s68 = ssub.s32 %s18, %s37
      %s69 = ssub.s32 %s20, %s29
      %s70 = sor.u32 %s68, %s69
      %p71 = scmp.eq.s32.totalorder %s70, 0
      %s73 = sadd.s32 %s72, 1
      %s74 = scalar_select %p71, %s72, %s73
      %p77 = pneg %p71
      %p78 = scmp.eq.s32.totalorder %s11, 1
      %p79 = por %p77, %p78
      %p80 = scmp.ne.s32.totalorder %s72, %s75
      %p81 = scmp.eq.s32.totalorder %s11, 0
      %p82 = por %p80, %p81
      %p83 = scmp.ne.s32.totalorder %s72, %s75
      %p84 = scmp.eq.s32.totalorder %s16, 1
      %p85 = por %p83, %p84
      %p86 = scmp.ne.s32.totalorder %s75, %s76
      %p87 = scmp.eq.s32.totalorder %s16, 0
      %p88 = por %p86, %p87
      %p89 = scmp.ne.s32.totalorder %s75, %s76
      %p90 = scmp.eq.s32.totalorder %s17, 1
      %p91 = por %p89, %p90
      %p93 = scmp.ne.s32.totalorder %s76, %s92
      %p94 = scmp.eq.s32.totalorder %s17, 0
      %p95 = por %p93, %p94
      %s96 = ssub.s32 %s18, %s37
      %s97 = ssub.s32 %s19, %s33
      %s98 = sor.u32 %s96, %s97
      %s99 = ssub.s32 %s20, %s29
      %s100 = sor.u32 %s98, %s99
      %p101 = scmp.eq.s32.totalorder %s100, 0
      %s103 = sadd.s32 %s102, 1
      %s104 = scalar_select %p101, %s102, %s103
      %p107 = pneg %p101
      %p108 = scmp.eq.s32.totalorder %s11, 1
      %p109 = por %p107, %p108
      %p110 = scmp.ne.s32.totalorder %s102, %s105
      %p111 = scmp.eq.s32.totalorder %s11, 0
      %p112 = por %p110, %p111
      %p113 = scmp.ne.s32.totalorder %s102, %s105
      %p114 = scmp.eq.s32.totalorder %s16, 1
      %p115 = por %p113, %p114
      %p116 = scmp.ne.s32.totalorder %s105, %s106
      %p117 = scmp.eq.s32.totalorder %s16, 0
      %p118 = por %p116, %p117
      %p119 = scmp.ne.s32.totalorder %s105, %s106
      %p120 = scmp.eq.s32.totalorder %s17, 1
      %p121 = por %p119, %p120
      %p123 = scmp.ne.s32.totalorder %s106, %s122
      %p124 = scmp.eq.s32.totalorder %s17, 0
      %p125 = por %p123, %p124
      %p126 = scmp.le.s32.totalorder 1, %s11
      %p127 = scmp.lt.s32.totalorder %s11, 3
      %p128 = pnand %p126, %p127
      %p129 = pneg %p128
      // Predicated region
      $region9: #{drop_block_1d.1} parent=5 // pred_check
        _
      $region10: #{drop_block_1d.1} parent=5 // pred_check_branch
        %131 = sbr.rel (%p128) target = $region12
      $region11: #{drop_block_1d.1} parent=5 // pred_region
        %s132 = ssub.s32 %s11, 1
      $region12: #{drop_block_1d.1} parent=5 // pred_fallthru
        _
      %p133 = scmp.lt.s32.totalorder %s11, 2
      // Predicated region
      $region13: #{drop_block_1d.1} parent=5 // pred_check
        %p134 = pneg %p133
      $region14: #{drop_block_1d.1} parent=5 // pred_check_branch
        %136 = sbr.rel (%p134) target = $region16
      $region15: #{drop_block_1d.1} parent=5 // pred_region
        // Predicated region
        $region17: #{drop_block_1d.1} parent=15 // pred_check
          %p137 = pneg %p54
        $region18: #{drop_block_1d.1} parent=15 // pred_check_branch
          %139 = sbr.rel (%p137) target = $region20
        $region19: #{drop_block_1d.1} parent=15 // pred_region
          %p140 = scmp.lt.s32.totalorder %s18, 1
          %s141 = scalar_select %p140, %s18, 1
          %p142 = scmp.lt.s32.totalorder %s19, 0
          %s143 = scalar_select %p142, %s19, 0
          %p144 = scmp.lt.s32.totalorder %s20, 0
          %s145 = scalar_select %p144, %s20, 0
          %s146 = sadd.s32 %s145, %s143
          %s147 = sadd.s32 %s146, %s141
          %s148 = smul.addr %s147, 4
          %s149 = scalar_lea.vmem %s0, %s148
        $region20: #{drop_block_1d.1} parent=15 // pred_fallthru
          _
        // Predicated region
        $region21: #{drop_block_1d.1} parent=15 // pred_check
          %p150 = pneg %p82
        $region22: #{drop_block_1d.1} parent=15 // pred_check_branch
          %152 = sbr.rel (%p150) target = $region24
        $region23: #{drop_block_1d.1} parent=15 // pred_region
          %p153 = scmp.lt.s32.totalorder %s18, 1
          %s154 = scalar_select %p153, %s18, 1
          %p155 = scmp.lt.s32.totalorder %s20, 0
          %s156 = scalar_select %p155, %s20, 0
          %s157 = sadd.s32 %s156, %s154
          %s158 = scalar_lea.vmem %s1, %s157
        $region24: #{drop_block_1d.1} parent=15 // pred_fallthru
          _
      $region16: #{drop_block_1d.1} parent=5 // pred_fallthru
        _
      %p159 = scmp.le.s32.totalorder 1, %s11
      %p160 = scmp.lt.s32.totalorder %s11, 3
      %p161 = pnand %p159, %p160
      %p162 = pneg %p161
      // Predicated region
      $region25: #{drop_block_1d.1} parent=5 // pred_check
        _
      $region26: #{drop_block_1d.1} parent=5 // pred_check_branch
        %164 = sbr.rel (%p161) target = $region28
      $region27: #{drop_block_1d.1} parent=5 // pred_region
        %s165 = ssub.s32 %s11, 1
        %p166 = scmp.lt.s32.totalorder %s21, 1
        %s167 = scalar_select %p166, %s21, 1
        %p168 = scmp.lt.s32.totalorder %s22, 0
        %s169 = scalar_select %p168, %s22, 0
        %p170 = scmp.lt.s32.totalorder %s23, 0
        %s171 = scalar_select %p170, %s23, 0
        %s172 = sadd.s32 %s171, %s169
        %s173 = sadd.s32 %s172, %s167
        %s174 = smul.addr %s173, 4
        %s175 = scalar_lea.vmem %s0, %s174
        %p176 = pneg %p60
        %p177 = pneg %p57
        %p178 = scmp.lt.s32.totalorder %s21, 1
        %s179 = scalar_select %p178, %s21, 1
        %p180 = scmp.lt.s32.totalorder %s23, 0
        %s181 = scalar_select %p180, %s23, 0
        %s182 = sadd.s32 %s181, %s179
        %s183 = scalar_lea.vmem %s1, %s182
        %p184 = pneg %p88
        %p185 = pneg %p85
        %p186 = pneg %p118
        %p187 = pneg %p115
        %s188 = sand.u32 %s105, 1
        %s189 = scalar_lea.sflag [#allocation3], %s188
        %s190 = sand.u32 %s105, 1
        %s191 = smul.addr %s190, 4
        %s192 = scalar_lea.vmem [#allocation2], %s191
        %p193 = scmp.lt.s32.totalorder %s21, 1
        %s194 = scalar_select %p193, %s21, 1
        %p195 = scmp.lt.s32.totalorder %s22, 0
        %s196 = scalar_select %p195, %s22, 0
        %p197 = scmp.lt.s32.totalorder %s23, 0
        %s198 = scalar_select %p197, %s23, 0
        %s199 = sadd.s32 %s198, %s196
        %s200 = sadd.s32 %s199, %s194
        %s201 = smul.addr %s200, 4
        %s202 = scalar_lea.vmem %s0, %s201
        %p203 = scmp.lt.s32.totalorder %s21, 1
        %s204 = scalar_select %p203, %s21, 1
        %p205 = scmp.lt.s32.totalorder %s23, 0
        %s206 = scalar_select %p205, %s23, 0
        %s207 = sadd.s32 %s206, %s204
        %s208 = scalar_lea.vmem %s1, %s207
        %v209 = vld [vmem:[%s208] sm:$0x1]
        %v210 = vld [vmem:[%s202] sm:$0xf]
        %v212 = vlaneseq
        %v213 = vshrl.u32 %v212, 7
        %v214 = vsub.s32 0, %v213
        %v215 = vrot.slane %v209, %v214
        %v217 = vmul.f32 %v210, %v215
        %218 = vst [vmem:[%s192] sm:$0xf] %v217
        %s219 = sand.u32 %s105, 1
        %s220 = scalar_lea.sflag [#allocation3], %s219
        %s221 = sand.u32 %s105, 1
        %s222 = smul.addr %s221, 4
        %s223 = scalar_lea.vmem [#allocation2], %s222
        // Predicated region
        $region29: #{drop_block_1d.1} parent=27 // pred_check
          %p224 = pneg %p115
        $region30: #{drop_block_1d.1} parent=27 // pred_check_branch
          %226 = sbr.rel (%p224) target = $region32
        $region31: #{drop_block_1d.1} parent=27 // pred_region
          %s228 = ssub.s32 64, 64
          %229 = vsyncadd %s220, %s228
          %s230 = sadd.s32 %s23, %s22
          %s231 = sadd.s32 %s230, %s21
          %s232 = smul.addr %s231, 64
          %s233 = scalar_lea.hbm %s2, %s232
          %s235 = sshll.u32 %s223, 4
          %s236 = int_to_ptr.vmem [resolvable:$true] %s235
          %238 = dma.vmem_to_hbm [thread:$0]  %s236, 64, %s233, %s220
        $region32: #{drop_block_1d.1} parent=27 // pred_fallthru
          _
      $region28: #{drop_block_1d.1} parent=5 // pred_fallthru
        _
      %p239 = scmp.le.s32.totalorder 2, %s11
      // Predicated region
      $region33: #{drop_block_1d.1} parent=5 // pred_check
        %p240 = pneg %p239
      $region34: #{drop_block_1d.1} parent=5 // pred_check_branch
        %242 = sbr.rel (%p240) target = $region36
      $region35: #{drop_block_1d.1} parent=5 // pred_region
        %s243 = ssub.s32 %s11, 2
        // Predicated region
        $region37: #{drop_block_1d.1} parent=35 // pred_check
          %p244 = pneg %p121
        $region38: #{drop_block_1d.1} parent=35 // pred_check_branch
          %246 = sbr.rel (%p244) target = $region40
        $region39: #{drop_block_1d.1} parent=35 // pred_region
          %s247 = sand.u32 %s106, 1
          %s248 = scalar_lea.sflag [#allocation3], %s247
          %s249 = sand.u32 %s106, 1
          %s250 = smul.addr %s249, 4
          %s251 = scalar_lea.vmem [#allocation2], %s250
          %252 = dma.done %s248, 64
        $region40: #{drop_block_1d.1} parent=35 // pred_fallthru
          _
      $region36: #{drop_block_1d.1} parent=5 // pred_fallthru
        _
    $region6: #{drop_block_1d.1} parent=1 // loop_footer
      %s15 = sadd.s32 1, %s11
    $region7: #{drop_block_1d.1} parent=1 // loop_footer_branch
      %10 = sbr.rel target = $region3
    $region8: #{drop_block_1d.1} parent=1 // loop_exit
      _
    %253 = vsyncpa [#allocation3], 1
    %s254 = scalar_lea.sflag [#allocation3], 1
    %255 = vsyncpa %s254, 1

</llo_original>
